<compile_context>
chip_gen: v5e
topology: v5e:2x2
jax: 0.10.0
libtpu: 0.0.40
codegen_flags: <defaults>
</compile_context>

<pallas_src>
import jax
import jax.numpy as jnp
from jax.experimental import pallas as pl
from jax.experimental.pallas import tpu as pltpu


def bahdanau_kernel(hid_ref, enc_ref, mask_ref, wh_ref, ws_ref, b_ref, v_ref,
                    ctx_ref, attn_ref):
    TB, S, E = enc_ref.shape
    H = ws_ref.shape[1]

    enc = enc_ref[...]                                    # [TB, S, E] bf16

    # encoder_features = W_h(encoder_outputs): one [TB*S, E] @ [E, H] MXU pass
    # (bf16 in, f32 accumulate). S and E are (8,128)-aligned by the wrapper, so
    # the reshapes are free views (no VMEM relayout copy).
    enc_feat = jnp.dot(enc.reshape(TB * S, E), wh_ref[...],
                       preferred_element_type=jnp.float32).reshape(TB, S, H)

    # decoder_features = W_s(hidden) + (b_h + b_s): bias added on the small
    # [TB, H] tensor instead of the [TB*S, H] one.
    dec_feat = jnp.dot(hid_ref[...], ws_ref[...],
                       preferred_element_type=jnp.float32) + b_ref[...]   # [TB, H]

    # tanh(enc_feat + dec_feat), dec_feat broadcast over source positions (EUP).
    t = jnp.tanh(enc_feat + dec_feat[:, None, :])         # [TB, S, H] f32

    # energy = V(t) with the V bias dropped (softmax is shift invariant).
    # N=1 projection -> VPU multiply + lane (XLU) reduce, keeps the MXU free.
    energy = jnp.sum(t * v_ref[...], axis=-1)             # [TB, S]

    # masked_fill(mask, -1e9) then softmax over src_len (exact divide).
    energy = jnp.where(mask_ref[...] > 0.5, -1e9, energy)
    m = jnp.max(energy, axis=-1, keepdims=True)
    e = jnp.exp(energy - m)
    w = e / jnp.sum(e, axis=-1, keepdims=True)            # [TB, S], rows sum to 1
    attn_ref[...] = w.astype(attn_ref.dtype)

    # context = attn @ encoder_outputs (M=1 per row): VPU broadcast-multiply +
    # XLU sublane reduce, f32 accumulate.
    # TODO(synk): if a bundle dump shows the VALU slot saturating at large E,
    # move this to the MXU as a batched bf16 dot_general.
    ctx_ref[...] = jnp.sum(w[:, :, None] * enc, axis=1).astype(ctx_ref.dtype)  # [TB, E]


def _round_up(x, m):
    return ((x + m - 1) // m) * m


def _default_vmem_limit():
    """3/4 of physical VMEM, capped at 96 MiB; conservative 48 MiB fallback."""
    phys = 64 * 1024 * 1024   # v7x physical per-TC VMEM (smallest of v5e/v6e/v7x)
    try:
        info = pltpu.get_tpu_info()
        phys = int(getattr(info, "vmem_capacity_bytes", phys))
    except Exception:
        pass
    return min((3 * phys) // 4, 96 * 1024 * 1024)


def _pick_tb(B, S, E, H, budget_bytes):
    """Largest legal batch tile whose working set fits, preferring >= 2 grid steps."""
    def footprint(tb):
        in_dbl = 2 * (tb * H * 2 + tb * S * E * 2 + tb * S * 4)      # bf16 hid/enc, f32 mask
        out_dbl = 2 * (tb * E * 4 + tb * S * 4)                       # f32 ctx/attn
        weights = 2 * (E * H * 2 + H * H * 2 + H * 4 + H * 4)         # double-buffered weights
        inter = (2 * tb * S * H * 4          # enc_feat + tanh temp (f32)
                 + tb * S * E * 4            # w*enc product before the S reduce (f32)
                 + tb * (H + 2 * S + E) * 4)  # dec_feat / energy / exp / ctx accum
        return in_dbl + out_dbl + weights + inter

    # Sublane-legal tiles: tb divides B and is a multiple of 8 (or the whole batch).
    cands = [tb for tb in range(1, B + 1)
             if B % tb == 0 and (tb % 8 == 0 or tb == B)]
    fitting = [tb for tb in cands if footprint(tb) <= budget_bytes]
    if not fitting:
        return min(cands)
    # Prefer an even number of grid steps so v7x megacore can split the batch.
    even_multi = [tb for tb in fitting if (B // tb) >= 2 and (B // tb) % 2 == 0]
    multi = [tb for tb in fitting if (B // tb) >= 2]
    if even_multi:
        return max(even_multi)
    if multi:
        return max(multi)
    return max(fitting)


def bahdanau_attention(hidden, encoder_outputs, mask_f, wh, bh, ws, bs, v_row, bv,
                       *, vmem_limit_bytes=None):
    B, S, E = encoder_outputs.shape
    H = hidden.shape[-1]

    if vmem_limit_bytes is None:
        vmem_limit_bytes = _default_vmem_limit()

    # Lane-dense padding of the source-length and encoder dims (sliced off after).
    S_pad = max(_round_up(S, 128), 128)
    E_pad = max(_round_up(E, 128), 128)

    hidden2 = hidden.reshape(B, H).astype(jnp.bfloat16)
    enc_p = jnp.pad(encoder_outputs,
                    ((0, 0), (0, S_pad - S), (0, E_pad - E))).astype(jnp.bfloat16)
    mask_p = jnp.pad(mask_f.reshape(B, S).astype(jnp.float32),
                     ((0, 0), (0, S_pad - S)), constant_values=1.0)  # pad = masked
    wh_p = jnp.pad(wh, ((0, E_pad - E), (0, 0))).astype(jnp.bfloat16)  # zero rows: no effect
    ws_b = ws.astype(jnp.bfloat16)
    b_comb = (bh + bs).astype(jnp.float32)   # fold the two Linear biases; bv dropped
    v32 = v_row.astype(jnp.float32)
    del bv  # softmax is shift invariant; V's bias cannot change the output

    TB = _pick_tb(B, S_pad, E_pad, H, budget_bytes=(vmem_limit_bytes * 3) // 4)
    grid = (B // TB,)

    cost = pl.CostEstimate(
        flops=2 * B * S_pad * E_pad * H + 2 * B * H * H
              + 2 * B * S_pad * H + 2 * B * S_pad * E_pad,
        transcendentals=B * S_pad * H + B * S_pad,
        bytes_accessed=2 * B * S_pad * E_pad + 2 * B * H + 4 * B * S_pad
                       + 2 * (E_pad * H + H * H) + 4 * 2 * H
                       + 4 * (B * E_pad + B * S_pad),
    )

    ctx_p, attn_p = pl.pallas_call(
        bahdanau_kernel,
        out_shape=(jax.ShapeDtypeStruct((B, E_pad), jnp.float32),
                   jax.ShapeDtypeStruct((B, S_pad), jnp.float32)),
        grid_spec=pltpu.PrefetchScalarGridSpec(
            num_scalar_prefetch=0,
            grid=grid,
            in_specs=[
                pl.BlockSpec((TB, H),            lambda b: (b, 0)),     # hidden (bf16)
                pl.BlockSpec((TB, S_pad, E_pad), lambda b: (b, 0, 0)),  # encoder_outputs (bf16)
                pl.BlockSpec((TB, S_pad),        lambda b: (b, 0)),     # mask (f32)
                pl.BlockSpec((E_pad, H),         lambda b: (0, 0)),     # W_h^T (resident)
                pl.BlockSpec((H, H),             lambda b: (0, 0)),     # W_s^T (resident)
                pl.BlockSpec((1, H),             lambda b: (0, 0)),     # b_h + b_s
                pl.BlockSpec((1, H),             lambda b: (0, 0)),     # V (row)
            ],
            out_specs=[
                pl.BlockSpec((TB, E_pad), lambda b: (b, 0)),            # context slab
                pl.BlockSpec((TB, S_pad), lambda b: (b, 0)),            # attention slab
            ],
        ),
        compiler_params=pltpu.CompilerParams(
            dimension_semantics=("parallel",),
            vmem_limit_bytes=vmem_limit_bytes,
        ),
        cost_estimate=cost,
    )(hidden2, enc_p, mask_p, wh_p, ws_b, b_comb, v32)

    ctx = ctx_p[:, :E].reshape(B, 1, E)
    attn = attn_p[:, :S].reshape(B, 1, S)
    return ctx, attn


def reference(hidden, encoder_outputs, mask_bool, wh, bh, ws, bs, v_row, bv):
    # Pure-JAX f32 reference mirroring the PyTorch forward.
    enc_feat = encoder_outputs @ wh + bh[0]            # [B, S, H]
    dec_feat = hidden @ ws + bs[0]                     # [B, 1, H]
    energy = (jnp.tanh(enc_feat + dec_feat) @ v_row[0][:, None])[..., 0] + bv[0, 0]  # [B, S]
    energy = jnp.where(mask_bool, -1e9, energy)
    attn = jax.nn.softmax(energy, axis=1)[:, None, :]  # [B, 1, S]
    ctx = attn @ encoder_outputs                       # [B, 1, E]
    return ctx, attn


if __name__ == "__main__":
    B, S, E, H = 2, 8, 32, 32
    key = jax.random.PRNGKey(0)
    k = jax.random.split(key, 8)

    hidden = jax.random.normal(k[0], (B, 1, H), dtype=jnp.float32)
    encoder_outputs = jax.random.normal(k[1], (B, S, E), dtype=jnp.float32)

    # Deterministic parameter init (Linear-style scaling; synthetic, not a checkpoint).
    wh = jax.random.normal(k[2], (E, H), dtype=jnp.float32) / jnp.sqrt(E)     # W_h^T
    bh = jax.random.normal(k[3], (1, H), dtype=jnp.float32) / jnp.sqrt(E)
    ws = jax.random.normal(k[4], (H, H), dtype=jnp.float32) / jnp.sqrt(H)     # W_s^T
    bs = jax.random.normal(k[5], (1, H), dtype=jnp.float32) / jnp.sqrt(H)
    v_row = jax.random.normal(k[6], (1, H), dtype=jnp.float32) / jnp.sqrt(H)  # V (row vector)
    bv = jax.random.normal(k[7], (1, 1), dtype=jnp.float32) / jnp.sqrt(H)

    # Mask: True = masked position (e.g. padding beyond per-example length).
    lengths = jnp.array([6, 8], dtype=jnp.int32)
    mask_bool = jnp.arange(S)[None, :] >= lengths[:, None]          # [B, S] bool
    mask_f = mask_bool.astype(jnp.float32)

    ctx, attn = bahdanau_attention(hidden, encoder_outputs, mask_f,
                                   wh, bh, ws, bs, v_row, bv)
    jax.block_until_ready((ctx, attn))

    ctx_ref, attn_ref = reference(hidden, encoder_outputs, mask_bool,
                                  wh, bh, ws, bs, v_row, bv)
    assert ctx.shape == (B, 1, E) and attn.shape == (B, 1, S)
    # Tolerance sized for bf16 inputs on the matmul path (f32 accumulation).
    assert jnp.allclose(attn, attn_ref, atol=2e-2, rtol=2e-2)
    assert jnp.allclose(ctx, ctx_ref, atol=2e-2, rtol=2e-2)
    # Attention rows (unmasked positions) must still sum to 1 exactly-ish (exact divide).
    assert jnp.allclose(attn.sum(-1), 1.0, atol=1e-5)

    print("KERNEL_OK")
</pallas_src>

<mosaic_0001>
module attributes {stable_mosaic.version = 11 : i64} {
  func.func @bahdanau_kernel(%arg0: i32, %arg1: memref<2x32xbf16, #tpu.memory_space<vmem>>, %arg2: memref<2x128x128xbf16, #tpu.memory_space<vmem>>, %arg3: memref<2x128xf32, #tpu.memory_space<vmem>>, %arg4: memref<128x32xbf16, #tpu.memory_space<vmem>>, %arg5: memref<32x32xbf16, #tpu.memory_space<vmem>>, %arg6: memref<1x32xf32, #tpu.memory_space<vmem>>, %arg7: memref<1x32xf32, #tpu.memory_space<vmem>>, %arg8: memref<2x128xf32, #tpu.memory_space<vmem>>, %arg9: memref<2x128xf32, #tpu.memory_space<vmem>>) attributes {dimension_semantics = [#tpu.dimension_semantics<parallel>], iteration_bounds = array<i64: 1>, scalar_prefetch = 0 : i64, scratch_operands = 0 : i64, tpu.core_type = #tpu.core_type<tc>, window_params = [{transform_indices = @transform_0, window_bounds = array<i64: 2, 32>}, {transform_indices = @transform_1, window_bounds = array<i64: 2, 128, 128>}, {transform_indices = @transform_2, window_bounds = array<i64: 2, 128>}, {pipeline_mode = #tpu.pipeline_mode<synchronous>, transform_indices = @transform_3, window_bounds = array<i64: 128, 32>}, {pipeline_mode = #tpu.pipeline_mode<synchronous>, transform_indices = @transform_4, window_bounds = array<i64: 32, 32>}, {pipeline_mode = #tpu.pipeline_mode<synchronous>, transform_indices = @transform_5, window_bounds = array<i64: 1, 32>}, {pipeline_mode = #tpu.pipeline_mode<synchronous>, transform_indices = @transform_6, window_bounds = array<i64: 1, 32>}, {transform_indices = @transform_7, window_bounds = array<i64: 2, 128>}, {transform_indices = @transform_8, window_bounds = array<i64: 2, 128>}]} {
    %c0 = arith.constant 0 : index
    %c0_0 = arith.constant 0 : index
    %c0_1 = arith.constant 0 : index
    %0 = vector.load %arg2[%c0, %c0_0, %c0_1] : memref<2x128x128xbf16, #tpu.memory_space<vmem>>, vector<2x128x128xbf16>
    %1 = vector.shape_cast %0 : vector<2x128x128xbf16> to vector<256x128xbf16>
    %c0_2 = arith.constant 0 : index
    %c0_3 = arith.constant 0 : index
    %2 = vector.load %arg4[%c0_2, %c0_3] : memref<128x32xbf16, #tpu.memory_space<vmem>>, vector<128x32xbf16>
    %cst = arith.constant dense<0.000000e+00> : vector<256x32xf32>
    %3 = tpu.matmul %1, %2, %cst {dimension_numbers = #tpu.dot_dimension_numbers<[1], [0], [0], [1], [0, 0, 1, 1], [], []>} : vector<256x128xbf16>, vector<128x32xbf16>, vector<256x32xf32> -> vector<256x32xf32>
    %4 = vector.shape_cast %3 : vector<256x32xf32> to vector<2x128x32xf32>
    %c0_4 = arith.constant 0 : index
    %c0_5 = arith.constant 0 : index
    %5 = vector.load %arg1[%c0_4, %c0_5] : memref<2x32xbf16, #tpu.memory_space<vmem>>, vector<2x32xbf16>
    %c0_6 = arith.constant 0 : index
    %c0_7 = arith.constant 0 : index
    %6 = vector.load %arg5[%c0_6, %c0_7] : memref<32x32xbf16, #tpu.memory_space<vmem>>, vector<32x32xbf16>
    %cst_8 = arith.constant dense<0.000000e+00> : vector<2x32xf32>
    %7 = tpu.matmul %5, %6, %cst_8 {dimension_numbers = #tpu.dot_dimension_numbers<[1], [0], [0], [1], [0, 0, 1, 1], [], []>} : vector<2x32xbf16>, vector<32x32xbf16>, vector<2x32xf32> -> vector<2x32xf32>
    %c0_9 = arith.constant 0 : index
    %c0_10 = arith.constant 0 : index
    %8 = vector.load %arg6[%c0_9, %c0_10] : memref<1x32xf32, #tpu.memory_space<vmem>>, vector<1x32xf32>
    %9 = vector.broadcast %8 : vector<1x32xf32> to vector<2x32xf32>
    %10 = arith.addf %7, %9 : vector<2x32xf32>
    %11 = vector.shape_cast %10 : vector<2x32xf32> to vector<2x1x32xf32>
    %12 = vector.broadcast %11 : vector<2x1x32xf32> to vector<2x128x32xf32>
    %13 = arith.addf %4, %12 : vector<2x128x32xf32>
    %14 = math.tanh %13 : vector<2x128x32xf32>
    %c0_11 = arith.constant 0 : index
    %c0_12 = arith.constant 0 : index
    %15 = vector.load %arg7[%c0_11, %c0_12] : memref<1x32xf32, #tpu.memory_space<vmem>>, vector<1x32xf32>
    %16 = vector.shape_cast %15 : vector<1x32xf32> to vector<1x1x32xf32>
    %17 = vector.broadcast %16 : vector<1x1x32xf32> to vector<2x128x32xf32>
    %18 = arith.mulf %14, %17 : vector<2x128x32xf32>
    %cst_13 = arith.constant dense<0.000000e+00> : vector<2x128xf32>
    %19 = vector.multi_reduction <add>, %18, %cst_13 [2] : vector<2x128x32xf32> to vector<2x128xf32>
    %c0_14 = arith.constant 0 : index
    %c0_15 = arith.constant 0 : index
    %20 = vector.load %arg3[%c0_14, %c0_15] : memref<2x128xf32, #tpu.memory_space<vmem>>, vector<2x128xf32>
    %cst_16 = arith.constant 5.000000e-01 : f32
    %21 = vector.broadcast %cst_16 : f32 to vector<2x128xf32>
    %22 = arith.cmpf ogt, %20, %21 : vector<2x128xf32>
    %cst_17 = arith.constant -1.000000e+09 : f32
    %23 = vector.broadcast %cst_17 : f32 to vector<2x128xf32>
    %24 = arith.select %22, %23, %19 : vector<2x128xi1>, vector<2x128xf32>
    %cst_18 = arith.constant dense<0xFF800000> : vector<2xf32>
    %25 = vector.multi_reduction <maximumf>, %24, %cst_18 [1] : vector<2x128xf32> to vector<2xf32>
    %26 = vector.shape_cast %25 : vector<2xf32> to vector<2x1xf32>
    %27 = vector.broadcast %26 : vector<2x1xf32> to vector<2x128xf32>
    %28 = arith.subf %24, %27 : vector<2x128xf32>
    %29 = math.exp %28 : vector<2x128xf32>
    %cst_19 = arith.constant dense<0.000000e+00> : vector<2xf32>
    %30 = vector.multi_reduction <add>, %29, %cst_19 [1] : vector<2x128xf32> to vector<2xf32>
    %31 = vector.shape_cast %30 : vector<2xf32> to vector<2x1xf32>
    %32 = vector.broadcast %31 : vector<2x1xf32> to vector<2x128xf32>
    %33 = arith.divf %29, %32 : vector<2x128xf32>
    %c0_20 = arith.constant 0 : index
    %c0_21 = arith.constant 0 : index
    %34 = vector.load %arg9[%c0_20, %c0_21] : memref<2x128xf32, #tpu.memory_space<vmem>>, vector<2x128xf32>
    tpu.vector_store %arg9[%c0_20, %c0_21], %33 {strides = array<i32>} : memref<2x128xf32, #tpu.memory_space<vmem>>, vector<2x128xf32>,
    %35 = vector.shape_cast %33 : vector<2x128xf32> to vector<2x128x1xf32>
    %36 = arith.extf %0 : vector<2x128x128xbf16> to vector<2x128x128xf32>
    %37 = vector.broadcast %35 : vector<2x128x1xf32> to vector<2x128x128xf32>
    %38 = arith.mulf %37, %36 : vector<2x128x128xf32>
    %cst_22 = arith.constant dense<0.000000e+00> : vector<2x128xf32>
    %39 = vector.multi_reduction <add>, %38, %cst_22 [1] : vector<2x128x128xf32> to vector<2x128xf32>
    %c0_23 = arith.constant 0 : index
    %c0_24 = arith.constant 0 : index
    %40 = vector.load %arg8[%c0_23, %c0_24] : memref<2x128xf32, #tpu.memory_space<vmem>>, vector<2x128xf32>
    tpu.vector_store %arg8[%c0_23, %c0_24], %39 {strides = array<i32>} : memref<2x128xf32, #tpu.memory_space<vmem>>, vector<2x128xf32>,
    return
  }
  func.func @transform_0(%arg0: i32) -> (i32, i32) {
    %c0_i32 = arith.constant 0 : i32
    %c0_i32_0 = arith.constant 0 : i32
    return %arg0, %c0_i32 : i32, i32
  }
  func.func @transform_1(%arg0: i32) -> (i32, i32, i32) {
    %c0_i32 = arith.constant 0 : i32
    %c0_i32_0 = arith.constant 0 : i32
    %c0_i32_1 = arith.constant 0 : i32
    return %arg0, %c0_i32, %c0_i32_0 : i32, i32, i32
  }
  func.func @transform_2(%arg0: i32) -> (i32, i32) {
    %c0_i32 = arith.constant 0 : i32
    %c0_i32_0 = arith.constant 0 : i32
    return %arg0, %c0_i32 : i32, i32
  }
  func.func @transform_3(%arg0: i32) -> (i32, i32) {
    %c0_i32 = arith.constant 0 : i32
    %c0_i32_0 = arith.constant 0 : i32
    %c0_i32_1 = arith.constant 0 : i32
    return %c0_i32, %c0_i32_0 : i32, i32
  }
  func.func @transform_4(%arg0: i32) -> (i32, i32) {
    %c0_i32 = arith.constant 0 : i32
    %c0_i32_0 = arith.constant 0 : i32
    %c0_i32_1 = arith.constant 0 : i32
    return %c0_i32, %c0_i32_0 : i32, i32
  }
  func.func @transform_5(%arg0: i32) -> (i32, i32) {
    %c0_i32 = arith.constant 0 : i32
    %c0_i32_0 = arith.constant 0 : i32
    %c0_i32_1 = arith.constant 0 : i32
    return %c0_i32, %c0_i32_0 : i32, i32
  }
  func.func @transform_6(%arg0: i32) -> (i32, i32) {
    %c0_i32 = arith.constant 0 : i32
    %c0_i32_0 = arith.constant 0 : i32
    %c0_i32_1 = arith.constant 0 : i32
    return %c0_i32, %c0_i32_0 : i32, i32
  }
  func.func @transform_7(%arg0: i32) -> (i32, i32) {
    %c0_i32 = arith.constant 0 : i32
    %c0_i32_0 = arith.constant 0 : i32
    return %arg0, %c0_i32 : i32, i32
  }
  func.func @transform_8(%arg0: i32) -> (i32, i32) {
    %c0_i32 = arith.constant 0 : i32
    %c0_i32_0 = arith.constant 0 : i32
    return %arg0, %c0_i32 : i32, i32
  }
}

</mosaic_0001>

<llo_original>
// kernel: tpu_custom_call.1
$region0: #{tpu_custom_call.1}
  #allocation0 [shape = 'u32[]', space=smem, size = 0x4, offset = 0x4, fixed_abs, tag = 'smem constant byte address 0x4 - core index']
  #allocation1 [shape = 'u32[72,128]{1,0:T(1,128)}', space=vmem, size = 0x9000, scoped, tag = 'internal scratch']
  %s0 = inlined_call_operand.vmem [shape: bf16[2,32], index: 0, kind: input, shape index: {}]
  %s1 = inlined_call_operand.hbm [shape: bf16[2,128,128], index: 1, kind: input, shape index: {}]
  %s2 = inlined_call_operand.vmem [shape: f32[2,128], index: 2, kind: input, shape index: {}]
  %s3 = inlined_call_operand.vmem [shape: bf16[128,32], index: 3, kind: input, shape index: {}]
  %s4 = inlined_call_operand.vmem [shape: bf16[32,32], index: 4, kind: input, shape index: {}]
  %s5 = inlined_call_operand.vmem [shape: f32[1,32], index: 5, kind: input, shape index: {}]
  %s6 = inlined_call_operand.vmem [shape: f32[1,32], index: 6, kind: input, shape index: {}]
  %s7 = inlined_call_operand.hbm [shape: f32[2,128], index: 7, kind: output, shape index: {0}]
  %s8 = inlined_call_operand.hbm [shape: f32[2,128], index: 8, kind: output, shape index: {1}]
  %9 = xla_tuple %s7, %s8
  %s10 = sld [smem:[#allocation0]]
  $region50: #{tpu_custom_call.1} parent=0
    _
  %s12 = ssub.s32 1, %s10
  %s13 = scalar_select 0, %s12, %s10
  $region1: #{tpu_custom_call.1} parent=0
    #allocation2 [shape = 'u8[65536]{0}', space=vmem, size = 0x10000, scoped, tag = 'input window, operand 1, single buffered']
    #allocation3 [shape = 's32[1]{0}', space=sflag, size = 0x4, scoped, tag = 'scoped memory for tpu_custom_call.1']
    #allocation4 [shape = 's32[1]{0}', space=sflag, size = 0x4, scoped, tag = 'scoped memory for tpu_custom_call.1']
    #allocation5 [shape = 'u8[1024]{0}', space=vmem, size = 0x400, scoped, tag = 'output window, operand 0, single buffered']
    #allocation6 [shape = 'u8[1024]{0}', space=vmem, size = 0x400, scoped, tag = 'output window, operand 1, single buffered']
    #allocation7 [shape = 's32[1]{0}', space=sflag, size = 0x4, scoped, tag = 'scoped memory for tpu_custom_call.1']
    %14 = vsyncpa [#allocation3], 0
    %15 = vsyncpa [#allocation4], 0
    %16 = vsyncpa [#allocation7], 0
    // Predicated region
    $region2: #{tpu_custom_call.1} parent=1 // pred_check
      _
    $region3: #{tpu_custom_call.1} parent=1 // pred_check_branch
      %18 = sbr.rel (0) target = $region5
    $region4: #{tpu_custom_call.1} parent=1 // pred_region
      _
    $region5: #{tpu_custom_call.1} parent=1 // pred_fallthru
      _
    // Predicated region
    $region6: #{tpu_custom_call.1} parent=1 // pred_check
      _
    $region7: #{tpu_custom_call.1} parent=1 // pred_check_branch
      %20 = sbr.rel (0) target = $region9
    $region8: #{tpu_custom_call.1} parent=1 // pred_region
      %22 = vsyncadd [#allocation3], 0
      %s23 = sshll.u32 %s1, 4
      %s24 = int_to_ptr.hbm [resolvable:$true] %s23
      %s25 = sshll.u32 [#allocation2], 4
      %s26 = int_to_ptr.vmem [resolvable:$true] %s25
      %31 = dma.hbm_to_vmem [thread:$0]  %s24, 2048, %s26, [#allocation3], 64, 64, 4
    $region9: #{tpu_custom_call.1} parent=1 // pred_fallthru
      _
    // Predicated region
    $region10: #{tpu_custom_call.1} parent=1 // pred_check
      _
    $region11: #{tpu_custom_call.1} parent=1 // pred_check_branch
      %33 = sbr.rel (0) target = $region13
    $region12: #{tpu_custom_call.1} parent=1 // pred_region
      _
    $region13: #{tpu_custom_call.1} parent=1 // pred_fallthru
      _
    // Predicated region
    $region14: #{tpu_custom_call.1} parent=1 // pred_check
      _
    $region15: #{tpu_custom_call.1} parent=1 // pred_check_branch
      %35 = sbr.rel (0) target = $region17
    $region16: #{tpu_custom_call.1} parent=1 // pred_region
      _
    $region17: #{tpu_custom_call.1} parent=1 // pred_fallthru
      _
    // Predicated region
    $region18: #{tpu_custom_call.1} parent=1 // pred_check
      _
    $region19: #{tpu_custom_call.1} parent=1 // pred_check_branch
      %37 = sbr.rel (0) target = $region21
    $region20: #{tpu_custom_call.1} parent=1 // pred_region
      _
    $region21: #{tpu_custom_call.1} parent=1 // pred_fallthru
      _
    // Predicated region
    $region22: #{tpu_custom_call.1} parent=1 // pred_check
      _
    $region23: #{tpu_custom_call.1} parent=1 // pred_check_branch
      %39 = sbr.rel (0) target = $region25
    $region24: #{tpu_custom_call.1} parent=1 // pred_region
      _
    $region25: #{tpu_custom_call.1} parent=1 // pred_fallthru
      _
    // Predicated region
    $region26: #{tpu_custom_call.1} parent=1 // pred_check
      _
    $region27: #{tpu_custom_call.1} parent=1 // pred_check_branch
      %41 = sbr.rel (0) target = $region29
    $region28: #{tpu_custom_call.1} parent=1 // pred_region
      _
    $region29: #{tpu_custom_call.1} parent=1 // pred_fallthru
      _
    // Predicated region
    $region30: #{tpu_custom_call.1} parent=1 // pred_check
      _
    $region31: #{tpu_custom_call.1} parent=1 // pred_check_branch
      %43 = sbr.rel (0) target = $region33
    $region32: #{tpu_custom_call.1} parent=1 // pred_region
      %45 = dma.done [#allocation3], 2048
    $region33: #{tpu_custom_call.1} parent=1 // pred_fallthru
      _
    %v47 = vld [vmem:[#allocation2] sm:$0xf]
    %v48 = vld [vmem:[#allocation2 + $0x4] sm:$0xf]
    %v49 = vld [vmem:[#allocation2 + $0x8] sm:$0xf]
    %v50 = vld [vmem:[#allocation2 + $0xc] sm:$0xf]
    %v51 = vld [vmem:[#allocation2 + $0x10] sm:$0xf]
    %v52 = vld [vmem:[#allocation2 + $0x14] sm:$0xf]
    %v53 = vld [vmem:[#allocation2 + $0x18] sm:$0xf]
    %v54 = vld [vmem:[#allocation2 + $0x1c] sm:$0xf]
    %v55 = vld [vmem:[#allocation2 + $0x20] sm:$0xf]
    %v56 = vld [vmem:[#allocation2 + $0x24] sm:$0xf]
    %v57 = vld [vmem:[#allocation2 + $0x28] sm:$0xf]
    %v58 = vld [vmem:[#allocation2 + $0x2c] sm:$0xf]
    %v59 = vld [vmem:[#allocation2 + $0x30] sm:$0xf]
    %v60 = vld [vmem:[#allocation2 + $0x34] sm:$0xf]
    %v61 = vld [vmem:[#allocation2 + $0x38] sm:$0xf]
    %v62 = vld [vmem:[#allocation2 + $0x3c] sm:$0xf]
    %v63 = vld [vmem:[#allocation2 + $0x40] sm:$0xf]
    %v64 = vld [vmem:[#allocation2 + $0x44] sm:$0xf]
    %v65 = vld [vmem:[#allocation2 + $0x48] sm:$0xf]
    %v66 = vld [vmem:[#allocation2 + $0x4c] sm:$0xf]
    %v67 = vld [vmem:[#allocation2 + $0x50] sm:$0xf]
    %v68 = vld [vmem:[#allocation2 + $0x54] sm:$0xf]
    %v69 = vld [vmem:[#allocation2 + $0x58] sm:$0xf]
    %v70 = vld [vmem:[#allocation2 + $0x5c] sm:$0xf]
    %v71 = vld [vmem:[#allocation2 + $0x60] sm:$0xf]
    %v72 = vld [vmem:[#allocation2 + $0x64] sm:$0xf]
    %v73 = vld [vmem:[#allocation2 + $0x68] sm:$0xf]
    %v74 = vld [vmem:[#allocation2 + $0x6c] sm:$0xf]
    %v75 = vld [vmem:[#allocation2 + $0x70] sm:$0xf]
    %v76 = vld [vmem:[#allocation2 + $0x74] sm:$0xf]
    %v77 = vld [vmem:[#allocation2 + $0x78] sm:$0xf]
    %v78 = vld [vmem:[#allocation2 + $0x7c] sm:$0xf]
    %v79 = vld [vmem:[%s3] sm:$0xf]
    %v80 = vld [vmem:[%s3 + $0x4] sm:$0xf]
    %v81 = vld [vmem:[%s3 + $0x8] sm:$0xf]
    %v82 = vld [vmem:[%s3 + $0xc] sm:$0xf]
    %v83 = vld [vmem:[%s3 + $0x10] sm:$0xf]
    %v84 = vld [vmem:[%s3 + $0x14] sm:$0xf]
    %v85 = vld [vmem:[%s3 + $0x18] sm:$0xf]
    %v86 = vld [vmem:[%s3 + $0x1c] sm:$0xf]
    %v87 = vld [vmem:[%s3 + $0x20] sm:$0xf]
    %v88 = vld [vmem:[%s3 + $0x24] sm:$0xf]
    %v89 = vld [vmem:[%s3 + $0x28] sm:$0xf]
    %v90 = vld [vmem:[%s3 + $0x2c] sm:$0xf]
    %v91 = vld [vmem:[%s3 + $0x30] sm:$0xf]
    %v92 = vld [vmem:[%s3 + $0x34] sm:$0xf]
    %v93 = vld [vmem:[%s3 + $0x38] sm:$0xf]
    %v94 = vld [vmem:[%s3 + $0x3c] sm:$0xf]
    %v127 = vunpack.c.l.b16 %v47
    %v128 = vunpack.c.l.b16 %v48
    %v129 = vunpack.c.l.b16 %v49
    %v130 = vunpack.c.l.b16 %v50
    %v131 = vunpack.c.l.b16 %v51
    %v132 = vunpack.c.l.b16 %v52
    %v133 = vunpack.c.l.b16 %v53
    %v134 = vunpack.c.l.b16 %v54
    %v135 = vunpack.c.l.b16 %v55
    %v136 = vunpack.c.l.b16 %v56
    %v137 = vunpack.c.l.b16 %v57
    %v138 = vunpack.c.l.b16 %v58
    %v139 = vunpack.c.l.b16 %v59
    %v140 = vunpack.c.l.b16 %v60
    %v141 = vunpack.c.l.b16 %v61
    %v142 = vunpack.c.l.b16 %v62
    %v143 = vunpack.c.l.b16 %v63
    %v144 = vunpack.c.l.b16 %v64
    %v145 = vunpack.c.l.b16 %v65
    %v146 = vunpack.c.l.b16 %v66
    %v147 = vunpack.c.l.b16 %v67
    %v148 = vunpack.c.l.b16 %v68
    %v149 = vunpack.c.l.b16 %v69
    %v150 = vunpack.c.l.b16 %v70
    %v151 = vunpack.c.l.b16 %v71
    %v152 = vunpack.c.l.b16 %v72
    %v153 = vunpack.c.l.b16 %v73
    %v154 = vunpack.c.l.b16 %v74
    %v155 = vunpack.c.l.b16 %v75
    %v156 = vunpack.c.l.b16 %v76
    %v157 = vunpack.c.l.b16 %v77
    %v158 = vunpack.c.l.b16 %v78
    %v159 = vpack.c.b16 %v128, %v127
    %v160 = vpack.c.b16 %v130, %v129
    %v161 = vpack.c.b16 %v132, %v131
    %v162 = vpack.c.b16 %v134, %v133
    %v163 = vpack.c.b16 %v136, %v135
    %v164 = vpack.c.b16 %v138, %v137
    %v165 = vpack.c.b16 %v140, %v139
    %v166 = vpack.c.b16 %v142, %v141
    %v167 = vpack.c.b16 %v144, %v143
    %v168 = vpack.c.b16 %v146, %v145
    %v169 = vpack.c.b16 %v148, %v147
    %v170 = vpack.c.b16 %v150, %v149
    %v171 = vpack.c.b16 %v152, %v151
    %v172 = vpack.c.b16 %v154, %v153
    %v173 = vpack.c.b16 %v156, %v155
    %v174 = vpack.c.b16 %v158, %v157
    %v207 = vunpack.c.l.b16 %v79
    %v208 = vunpack.c.l.b16 %v80
    %v209 = vunpack.c.l.b16 %v81
    %v210 = vunpack.c.l.b16 %v82
    %v211 = vunpack.c.l.b16 %v83
    %v212 = vunpack.c.l.b16 %v84
    %v213 = vunpack.c.l.b16 %v85
    %v214 = vunpack.c.l.b16 %v86
    %v215 = vunpack.c.l.b16 %v87
    %v216 = vunpack.c.l.b16 %v88
    %v217 = vunpack.c.l.b16 %v89
    %v218 = vunpack.c.l.b16 %v90
    %v219 = vunpack.c.l.b16 %v91
    %v220 = vunpack.c.l.b16 %v92
    %v221 = vunpack.c.l.b16 %v93
    %v222 = vunpack.c.l.b16 %v94
    %v223 = vpack.c.b16 %v208, %v207
    %v224 = vpack.c.b16 %v210, %v209
    %v225 = vpack.c.b16 %v212, %v211
    %v226 = vpack.c.b16 %v214, %v213
    %v227 = vpack.c.b16 %v216, %v215
    %v228 = vpack.c.b16 %v218, %v217
    %v229 = vpack.c.b16 %v220, %v219
    %v230 = vpack.c.b16 %v222, %v221
    %239 = vmatpush.bf16.msra.mxu0 %v230
    %240 = vmatpush.bf16.msra.mxu0 %v229
    %241 = vmatpush.bf16.msra.mxu0 %v228
    %242 = vmatpush.bf16.msra.mxu0 %v227
    %243 = vmatpush.bf16.msra.mxu0 %v226
    %244 = vmatpush.bf16.msra.mxu0 %v225
    %245 = vmatpush.bf16.msra.mxu0 %v224
    %246 = vmatpush.bf16.msra.mxu0 %v223
    %247 = vmatmul.bf16.gmra.mxu0 %v159
    %v248 = vpop.f32.mrf.mxu0
    %v249 = vadd.f32 0.0, %v248
    %v250 = vpop.f32.mrf.mxu0
    %v251 = vadd.f32 0.0, %v250
    %252 = vmatmul.bf16.gmra.mxu0 %v160
    %v253 = vpop.f32.mrf.mxu0
    %v254 = vadd.f32 0.0, %v253
    %v255 = vpop.f32.mrf.mxu0
    %v256 = vadd.f32 0.0, %v255
    %257 = vmatmul.bf16.gmra.mxu0 %v161
    %v258 = vpop.f32.mrf.mxu0
    %v259 = vadd.f32 0.0, %v258
    %v260 = vpop.f32.mrf.mxu0
    %v261 = vadd.f32 0.0, %v260
    %262 = vmatmul.bf16.gmra.mxu0 %v162
    %v263 = vpop.f32.mrf.mxu0
    %v264 = vadd.f32 0.0, %v263
    %v265 = vpop.f32.mrf.mxu0
    %v266 = vadd.f32 0.0, %v265
    %267 = vmatmul.bf16.gmra.mxu0 %v163
    %v268 = vpop.f32.mrf.mxu0
    %v269 = vadd.f32 0.0, %v268
    %v270 = vpop.f32.mrf.mxu0
    %v271 = vadd.f32 0.0, %v270
    %272 = vmatmul.bf16.gmra.mxu0 %v164
    %v273 = vpop.f32.mrf.mxu0
    %v274 = vadd.f32 0.0, %v273
    %v275 = vpop.f32.mrf.mxu0
    %v276 = vadd.f32 0.0, %v275
    %277 = vmatmul.bf16.gmra.mxu0 %v165
    %v278 = vpop.f32.mrf.mxu0
    %v279 = vadd.f32 0.0, %v278
    %v280 = vpop.f32.mrf.mxu0
    %v281 = vadd.f32 0.0, %v280
    %282 = vmatmul.bf16.gmra.mxu0 %v166
    %v283 = vpop.f32.mrf.mxu0
    %v284 = vadd.f32 0.0, %v283
    %v285 = vpop.f32.mrf.mxu0
    %v286 = vadd.f32 0.0, %v285
    %287 = vmatmul.bf16.gmra.mxu0 %v167
    %v288 = vpop.f32.mrf.mxu0
    %v289 = vadd.f32 0.0, %v288
    %v290 = vpop.f32.mrf.mxu0
    %v291 = vadd.f32 0.0, %v290
    %292 = vmatmul.bf16.gmra.mxu0 %v168
    %v293 = vpop.f32.mrf.mxu0
    %v294 = vadd.f32 0.0, %v293
    %v295 = vpop.f32.mrf.mxu0
    %v296 = vadd.f32 0.0, %v295
    %297 = vmatmul.bf16.gmra.mxu0 %v169
    %v298 = vpop.f32.mrf.mxu0
    %v299 = vadd.f32 0.0, %v298
    %v300 = vpop.f32.mrf.mxu0
    %v301 = vadd.f32 0.0, %v300
    %302 = vmatmul.bf16.gmra.mxu0 %v170
    %v303 = vpop.f32.mrf.mxu0
    %v304 = vadd.f32 0.0, %v303
    %v305 = vpop.f32.mrf.mxu0
    %v306 = vadd.f32 0.0, %v305
    %307 = vmatmul.bf16.gmra.mxu0 %v171
    %v308 = vpop.f32.mrf.mxu0
    %v309 = vadd.f32 0.0, %v308
    %v310 = vpop.f32.mrf.mxu0
    %v311 = vadd.f32 0.0, %v310
    %312 = vmatmul.bf16.gmra.mxu0 %v172
    %v313 = vpop.f32.mrf.mxu0
    %v314 = vadd.f32 0.0, %v313
    %v315 = vpop.f32.mrf.mxu0
    %v316 = vadd.f32 0.0, %v315
    %317 = vmatmul.bf16.gmra.mxu0 %v173
    %v318 = vpop.f32.mrf.mxu0
    %v319 = vadd.f32 0.0, %v318
    %v320 = vpop.f32.mrf.mxu0
    %v321 = vadd.f32 0.0, %v320
    %322 = vmatmul.bf16.gmra.mxu0 %v174
    %v323 = vpop.f32.mrf.mxu0
    %v324 = vadd.f32 0.0, %v323
    %v325 = vpop.f32.mrf.mxu0
    %v326 = vadd.f32 0.0, %v325
    %327 = vdwg.mxu0
    %v328 = vld [vmem:[%s0] sm:$0x1]
    %v329 = vld [vmem:[%s4] sm:$0xf]
    %v330 = vld [vmem:[%s4 + $0x4] sm:$0xf]
    %v331 = vld [vmem:[%s4 + $0x8] sm:$0xf]
    %v332 = vld [vmem:[%s4 + $0xc] sm:$0xf]
    %v333 = vld [vmem:[%s5] sm:$0x1]
    %v335 = vperm.slane %v333, 0
    %v341 = vunpack.c.l.b16 %v329
    %v342 = vunpack.c.l.b16 %v330
    %v343 = vunpack.c.l.b16 %v331
    %v344 = vunpack.c.l.b16 %v332
    %v345 = vpack.c.b16 %v342, %v341
    %v346 = vpack.c.b16 %v344, %v343
    %vm349 = vcmask 261120
    %v351 = vsel %vm349, %v328, 0
    %353 = vmatpush.bf16.msra.mxu0 0
    %354 = vmatpush.bf16.msra.mxu0 0
    %355 = vmatpush.bf16.msra.mxu0 0
    %356 = vmatpush.bf16.msra.mxu0 0
    %357 = vmatpush.bf16.msra.mxu0 0
    %358 = vmatpush.bf16.msra.mxu0 0
    %359 = vmatpush.bf16.msra.mxu0 %v346
    %360 = vmatpush.bf16.msra.mxu0 %v345
    %361 = vmatmul.bf16.gmra.mxu0 %v351
    %v362 = vpop.f32.mrf.mxu0
    %v363 = vadd.f32 %v335, %v362
    %v364 = vpop.f32.mrf.mxu0
    %365 = vdwg.mxu0
    %v367 = vrot.slane %v363, 1
    %v368 = vperm.slane %v363, 0
    %v369 = vperm.slane %v367, 0
    %v372 = vadd.f32 %v249, %v368
    %v373 = vadd.f32 %v251, %v368
    %v374 = vadd.f32 %v254, %v368
    %v375 = vadd.f32 %v256, %v368
    %v376 = vadd.f32 %v259, %v368
    %v377 = vadd.f32 %v261, %v368
    %v378 = vadd.f32 %v264, %v368
    %v379 = vadd.f32 %v266, %v368
    %v380 = vadd.f32 %v269, %v368
    %v381 = vadd.f32 %v271, %v368
    %v382 = vadd.f32 %v274, %v368
    %v383 = vadd.f32 %v276, %v368
    %v384 = vadd.f32 %v279, %v368
    %v385 = vadd.f32 %v281, %v368
    %v386 = vadd.f32 %v284, %v368
    %v387 = vadd.f32 %v286, %v368
    %v388 = vadd.f32 %v289, %v369
    %v389 = vadd.f32 %v291, %v369
    %v390 = vadd.f32 %v294, %v369
    %v391 = vadd.f32 %v296, %v369
    %v392 = vadd.f32 %v299, %v369
    %v393 = vadd.f32 %v301, %v369
    %v394 = vadd.f32 %v304, %v369
    %v395 = vadd.f32 %v306, %v369
    %v396 = vadd.f32 %v309, %v369
    %v397 = vadd.f32 %v311, %v369
    %v398 = vadd.f32 %v314, %v369
    %v399 = vadd.f32 %v316, %v369
    %v400 = vadd.f32 %v319, %v369
    %v401 = vadd.f32 %v321, %v369
    %v402 = vadd.f32 %v324, %v369
    %v403 = vadd.f32 %v326, %v369
    %v404 = vtanh.pop %v372
    %v405 = vtanh.pop %v373
    %v406 = vtanh.pop %v374
    %v407 = vtanh.pop %v375
    %v408 = vtanh.pop %v376
    %v409 = vtanh.pop %v377
    %v410 = vtanh.pop %v378
    %v411 = vtanh.pop %v379
    %v412 = vtanh.pop %v380
    %v413 = vtanh.pop %v381
    %v414 = vtanh.pop %v382
    %v415 = vtanh.pop %v383
    %v416 = vtanh.pop %v384
    %v417 = vtanh.pop %v385
    %v418 = vtanh.pop %v386
    %v419 = vtanh.pop %v387
    %v420 = vtanh.pop %v388
    %v421 = vtanh.pop %v389
    %v422 = vtanh.pop %v390
    %v423 = vtanh.pop %v391
    %v424 = vtanh.pop %v392
    %v425 = vtanh.pop %v393
    %v426 = vtanh.pop %v394
    %v427 = vtanh.pop %v395
    %v428 = vtanh.pop %v396
    %v429 = vtanh.pop %v397
    %v430 = vtanh.pop %v398
    %v431 = vtanh.pop %v399
    %v432 = vtanh.pop %v400
    %v433 = vtanh.pop %v401
    %v434 = vtanh.pop %v402
    %v435 = vtanh.pop %v403
    %v436 = vld [vmem:[%s6] sm:$0x1]
    %v438 = vperm.slane %v436, 0
    %v440 = vmul.f32 %v404, %v438
    %v441 = vmul.f32 %v405, %v438
    %v442 = vmul.f32 %v406, %v438
    %v443 = vmul.f32 %v407, %v438
    %v444 = vmul.f32 %v408, %v438
    %v445 = vmul.f32 %v409, %v438
    %v446 = vmul.f32 %v410, %v438
    %v447 = vmul.f32 %v411, %v438
    %v448 = vmul.f32 %v412, %v438
    %v449 = vmul.f32 %v413, %v438
    %v450 = vmul.f32 %v414, %v438
    %v451 = vmul.f32 %v415, %v438
    %v452 = vmul.f32 %v416, %v438
    %v453 = vmul.f32 %v417, %v438
    %v454 = vmul.f32 %v418, %v438
    %v455 = vmul.f32 %v419, %v438
    %v456 = vmul.f32 %v420, %v438
    %v457 = vmul.f32 %v421, %v438
    %v458 = vmul.f32 %v422, %v438
    %v459 = vmul.f32 %v423, %v438
    %v460 = vmul.f32 %v424, %v438
    %v461 = vmul.f32 %v425, %v438
    %v462 = vmul.f32 %v426, %v438
    %v463 = vmul.f32 %v427, %v438
    %v464 = vmul.f32 %v428, %v438
    %v465 = vmul.f32 %v429, %v438
    %v466 = vmul.f32 %v430, %v438
    %v467 = vmul.f32 %v431, %v438
    %v468 = vmul.f32 %v432, %v438
    %v469 = vmul.f32 %v433, %v438
    %v470 = vmul.f32 %v434, %v438
    %v471 = vmul.f32 %v435, %v438
    %v472 = vsel %vm349, %v440, 0.0
    %473 = vadd.xlane.f32.xlu0 %v472
    %v474 = vpop.xlane.xlu0 %473
    %v475 = vsel %vm349, %v441, 0.0
    %476 = vadd.xlane.f32.xlu0 %v475
    %v477 = vpop.xlane.xlu0 %476
    %v478 = vsel %vm349, %v442, 0.0
    %479 = vadd.xlane.f32.xlu0 %v478
    %v480 = vpop.xlane.xlu0 %479
    %v481 = vsel %vm349, %v443, 0.0
    %482 = vadd.xlane.f32.xlu0 %v481
    %v483 = vpop.xlane.xlu0 %482
    %v484 = vsel %vm349, %v444, 0.0
    %485 = vadd.xlane.f32.xlu0 %v484
    %v486 = vpop.xlane.xlu0 %485
    %v487 = vsel %vm349, %v445, 0.0
    %488 = vadd.xlane.f32.xlu0 %v487
    %v489 = vpop.xlane.xlu0 %488
    %v490 = vsel %vm349, %v446, 0.0
    %491 = vadd.xlane.f32.xlu0 %v490
    %v492 = vpop.xlane.xlu0 %491
    %v493 = vsel %vm349, %v447, 0.0
    %494 = vadd.xlane.f32.xlu0 %v493
    %v495 = vpop.xlane.xlu0 %494
    %v496 = vsel %vm349, %v448, 0.0
    %497 = vadd.xlane.f32.xlu0 %v496
    %v498 = vpop.xlane.xlu0 %497
    %v499 = vsel %vm349, %v449, 0.0
    %500 = vadd.xlane.f32.xlu0 %v499
    %v501 = vpop.xlane.xlu0 %500
    %v502 = vsel %vm349, %v450, 0.0
    %503 = vadd.xlane.f32.xlu0 %v502
    %v504 = vpop.xlane.xlu0 %503
    %v505 = vsel %vm349, %v451, 0.0
    %506 = vadd.xlane.f32.xlu0 %v505
    %v507 = vpop.xlane.xlu0 %506
    %v508 = vsel %vm349, %v452, 0.0
    %509 = vadd.xlane.f32.xlu0 %v508
    %v510 = vpop.xlane.xlu0 %509
    %v511 = vsel %vm349, %v453, 0.0
    %512 = vadd.xlane.f32.xlu0 %v511
    %v513 = vpop.xlane.xlu0 %512
    %v514 = vsel %vm349, %v454, 0.0
    %515 = vadd.xlane.f32.xlu0 %v514
    %v516 = vpop.xlane.xlu0 %515
    %v517 = vsel %vm349, %v455, 0.0
    %518 = vadd.xlane.f32.xlu0 %v517
    %v519 = vpop.xlane.xlu0 %518
    %v520 = vsel %vm349, %v456, 0.0
    %521 = vadd.xlane.f32.xlu0 %v520
    %v522 = vpop.xlane.xlu0 %521
    %v523 = vsel %vm349, %v457, 0.0
    %524 = vadd.xlane.f32.xlu0 %v523
    %v525 = vpop.xlane.xlu0 %524
    %v526 = vsel %vm349, %v458, 0.0
    %527 = vadd.xlane.f32.xlu0 %v526
    %v528 = vpop.xlane.xlu0 %527
    %v529 = vsel %vm349, %v459, 0.0
    %530 = vadd.xlane.f32.xlu0 %v529
    %v531 = vpop.xlane.xlu0 %530
    %v532 = vsel %vm349, %v460, 0.0
    %533 = vadd.xlane.f32.xlu0 %v532
    %v534 = vpop.xlane.xlu0 %533
    %v535 = vsel %vm349, %v461, 0.0
    %536 = vadd.xlane.f32.xlu0 %v535
    %v537 = vpop.xlane.xlu0 %536
    %v538 = vsel %vm349, %v462, 0.0
    %539 = vadd.xlane.f32.xlu0 %v538
    %v540 = vpop.xlane.xlu0 %539
    %v541 = vsel %vm349, %v463, 0.0
    %542 = vadd.xlane.f32.xlu0 %v541
    %v543 = vpop.xlane.xlu0 %542
    %v544 = vsel %vm349, %v464, 0.0
    %545 = vadd.xlane.f32.xlu0 %v544
    %v546 = vpop.xlane.xlu0 %545
    %v547 = vsel %vm349, %v465, 0.0
    %548 = vadd.xlane.f32.xlu0 %v547
    %v549 = vpop.xlane.xlu0 %548
    %v550 = vsel %vm349, %v466, 0.0
    %551 = vadd.xlane.f32.xlu0 %v550
    %v552 = vpop.xlane.xlu0 %551
    %v553 = vsel %vm349, %v467, 0.0
    %554 = vadd.xlane.f32.xlu0 %v553
    %v555 = vpop.xlane.xlu0 %554
    %v556 = vsel %vm349, %v468, 0.0
    %557 = vadd.xlane.f32.xlu0 %v556
    %v558 = vpop.xlane.xlu0 %557
    %v559 = vsel %vm349, %v469, 0.0
    %560 = vadd.xlane.f32.xlu0 %v559
    %v561 = vpop.xlane.xlu0 %560
    %v562 = vsel %vm349, %v470, 0.0
    %563 = vadd.xlane.f32.xlu0 %v562
    %v564 = vpop.xlane.xlu0 %563
    %v565 = vsel %vm349, %v471, 0.0
    %566 = vadd.xlane.f32.xlu0 %v565
    %v567 = vpop.xlane.xlu0 %566
    %v568 = vld [vmem:[%s2] sm:$0x3]
    %vm569 = vcmp.gt.f32.partialorder %v568, 0.5
    %v602 = vlaneseq
    %v603 = vand.u32 %v602, 127
    %v604 = vperm.slane %v474, %v603
    %v605 = vadd.s32 %v603, 4294967288
    %v606 = vperm.slane %v477, %v605
    %vm607 = vcmask 130112
    %v608 = vsel %vm607, %v606, %v604
    %v609 = vadd.s32 %v603, 4294967280
    %v610 = vperm.slane %v480, %v609
    %vm611 = vcmask 195712
    %v612 = vsel %vm611, %v610, %v608
    %v613 = vadd.s32 %v603, 4294967272
    %v614 = vperm.slane %v483, %v613
    %vm615 = vcmask 261312
    %v616 = vsel %vm615, %v614, %v612
    %v617 = vadd.s32 %v603, 4294967264
    %v618 = vperm.slane %v486, %v617
    %vm619 = vcmask 326912
    %v620 = vsel %vm619, %v618, %v616
    %v621 = vadd.s32 %v603, 4294967256
    %v622 = vperm.slane %v489, %v621
    %vm623 = vcmask 392512
    %v624 = vsel %vm623, %v622, %v620
    %v625 = vadd.s32 %v603, 4294967248
    %v626 = vperm.slane %v492, %v625
    %vm627 = vcmask 458112
    %v628 = vsel %vm627, %v626, %v624
    %v629 = vadd.s32 %v603, 4294967240
    %v630 = vperm.slane %v495, %v629
    %vm631 = vcmask 523712
    %v632 = vsel %vm631, %v630, %v628
    %v633 = vadd.s32 %v603, 4294967232
    %v634 = vperm.slane %v498, %v633
    %vm635 = vcmask 589312
    %v636 = vsel %vm635, %v634, %v632
    %v637 = vadd.s32 %v603, 4294967224
    %v638 = vperm.slane %v501, %v637
    %vm639 = vcmask 654912
    %v640 = vsel %vm639, %v638, %v636
    %v641 = vadd.s32 %v603, 4294967216
    %v642 = vperm.slane %v504, %v641
    %vm643 = vcmask 720512
    %v644 = vsel %vm643, %v642, %v640
    %v645 = vadd.s32 %v603, 4294967208
    %v646 = vperm.slane %v507, %v645
    %vm647 = vcmask 786112
    %v648 = vsel %vm647, %v646, %v644
    %v649 = vadd.s32 %v603, 4294967200
    %v650 = vperm.slane %v510, %v649
    %vm651 = vcmask 851712
    %v652 = vsel %vm651, %v650, %v648
    %v653 = vadd.s32 %v603, 4294967192
    %v654 = vperm.slane %v513, %v653
    %vm655 = vcmask 917312
    %v656 = vsel %vm655, %v654, %v652
    %v657 = vadd.s32 %v603, 4294967184
    %v658 = vperm.slane %v516, %v657
    %vm659 = vcmask 982912
    %v660 = vsel %vm659, %v658, %v656
    %v661 = vadd.s32 %v603, 4294967176
    %v662 = vperm.slane %v519, %v661
    %vm663 = vcmask 1048512
    %v664 = vsel %vm663, %v662, %v660
    %v665 = vperm.slane %v522, %v603
    %v666 = vperm.slane %v525, %v605
    %v667 = vsel %vm607, %v666, %v665
    %v668 = vperm.slane %v528, %v609
    %v669 = vsel %vm611, %v668, %v667
    %v670 = vperm.slane %v531, %v613
    %v671 = vsel %vm615, %v670, %v669
    %v672 = vperm.slane %v534, %v617
    %v673 = vsel %vm619, %v672, %v671
    %v674 = vperm.slane %v537, %v621
    %v675 = vsel %vm623, %v674, %v673
    %v676 = vperm.slane %v540, %v625
    %v677 = vsel %vm627, %v676, %v675
    %v678 = vperm.slane %v543, %v629
    %v679 = vsel %vm631, %v678, %v677
    %v680 = vperm.slane %v546, %v633
    %v681 = vsel %vm635, %v680, %v679
    %v682 = vperm.slane %v549, %v637
    %v683 = vsel %vm639, %v682, %v681
    %v684 = vperm.slane %v552, %v641
    %v685 = vsel %vm643, %v684, %v683
    %v686 = vperm.slane %v555, %v645
    %v687 = vsel %vm647, %v686, %v685
    %v688 = vperm.slane %v558, %v649
    %v689 = vsel %vm651, %v688, %v687
    %v690 = vperm.slane %v561, %v653
    %v691 = vsel %vm655, %v690, %v689
    %v692 = vperm.slane %v564, %v657
    %v693 = vsel %vm659, %v692, %v691
    %v694 = vperm.slane %v567, %v661
    %v695 = vsel %vm663, %v694, %v693
    %vm696 = vcmask 1041409
    %v697 = vsel %vm696, %v695, %v664
    %v699 = vsel %vm569, -1e+09, %v697
    %vm700 = vcmask 1041408
    %v701 = vsel %vm700, %v699, -inf
    %702 = vmax.xlane.f32.xlu0 %v701
    %v703 = vpop.xlane.xlu0 %702
    %v704 = vsub.f32 %v699, %v703
    %v705 = vmul.f32 %v704, 1.442695
    %v706 = vpow.pop %v705
    %v707 = vsel %vm700, %v706, 0.0
    %708 = vadd.xlane.f32.xlu0 %v707
    %v709 = vpop.xlane.xlu0 %708
    %v710 = vrcp.pop %v709
    %v711 = vmul.f32 %v709, %v710
    %v712 = vsub.f32 1.0, %v711
    %v713 = vmul.f32 %v710, %v712
    %v714 = vadd.f32 %v710, %v713
    %vm715 = vweird.f32 %v709
    %vm716 = vweird.f32 %v710
    %vm717 = vmor %vm715, %vm716
    %v718 = vsel %vm717, %v710, %v714
    %v719 = vand.u32 2147483647, %v709
    %vm720 = vcmp.eq.f32.partialorder %v719, 8.507059e+37
    %v721 = vand.u32 %v709, 2147483648
    %v722 = vor.u32 1.1754944e-38, %v721
    %v723 = vsel %vm720, %v722, %v718
    %v724 = vmul.f32 %v706, %v723
    %725 = vst [vmem:[#allocation6] sm:$0x3] %v724
    %v726 = vperm.slane %v724, 0
    %v727 = vlaneseq
    %v728 = vshrl.u32 %v727, 7
    %730 = vset.pattern.permute.xlu0 %v728
    %731 = vperm.xlu0 %730, %v726
    %v732 = vpop.permute.xlu0 %731
    %v733 = vlaneseq
    %v734 = vshrl.u32 %v733, 7
    %v735 = vadd.s32 %v734, 8
    %736 = vset.pattern.permute.xlu0 %v735
    %737 = vperm.xlu0 %736, %v726
    %v738 = vpop.permute.xlu0 %737
    %v739 = vlaneseq
    %v740 = vshrl.u32 %v739, 7
    %v741 = vadd.s32 %v740, 16
    %742 = vset.pattern.permute.xlu0 %v741
    %743 = vperm.xlu0 %742, %v726
    %v744 = vpop.permute.xlu0 %743
    %v745 = vlaneseq
    %v746 = vshrl.u32 %v745, 7
    %v747 = vadd.s32 %v746, 24
    %748 = vset.pattern.permute.xlu0 %v747
    %749 = vperm.xlu0 %748, %v726
    %v750 = vpop.permute.xlu0 %749
    %v751 = vlaneseq
    %v752 = vshrl.u32 %v751, 7
    %v753 = vadd.s32 %v752, 32
    %754 = vset.pattern.permute.xlu0 %v753
    %755 = vperm.xlu0 %754, %v726
    %v756 = vpop.permute.xlu0 %755
    %v757 = vlaneseq
    %v758 = vshrl.u32 %v757, 7
    %v759 = vadd.s32 %v758, 40
    %760 = vset.pattern.permute.xlu0 %v759
    %761 = vperm.xlu0 %760, %v726
    %v762 = vpop.permute.xlu0 %761
    %v763 = vlaneseq
    %v764 = vshrl.u32 %v763, 7
    %v765 = vadd.s32 %v764, 48
    %766 = vset.pattern.permute.xlu0 %v765
    %767 = vperm.xlu0 %766, %v726
    %v768 = vpop.permute.xlu0 %767
    %v769 = vlaneseq
    %v770 = vshrl.u32 %v769, 7
    %v771 = vadd.s32 %v770, 56
    %772 = vset.pattern.permute.xlu0 %v771
    %773 = vperm.xlu0 %772, %v726
    %v774 = vpop.permute.xlu0 %773
    %v775 = vlaneseq
    %v776 = vshrl.u32 %v775, 7
    %v777 = vadd.s32 %v776, 64
    %778 = vset.pattern.permute.xlu0 %v777
    %779 = vperm.xlu0 %778, %v726
    %v780 = vpop.permute.xlu0 %779
    %v781 = vlaneseq
    %v782 = vshrl.u32 %v781, 7
    %v783 = vadd.s32 %v782, 72
    %784 = vset.pattern.permute.xlu0 %v783
    %785 = vperm.xlu0 %784, %v726
    %v786 = vpop.permute.xlu0 %785
    %v787 = vlaneseq
    %v788 = vshrl.u32 %v787, 7
    %v789 = vadd.s32 %v788, 80
    %790 = vset.pattern.permute.xlu0 %v789
    %791 = vperm.xlu0 %790, %v726
    %v792 = vpop.permute.xlu0 %791
    %v793 = vlaneseq
    %v794 = vshrl.u32 %v793, 7
    %v795 = vadd.s32 %v794, 88
    %796 = vset.pattern.permute.xlu0 %v795
    %797 = vperm.xlu0 %796, %v726
    %v798 = vpop.permute.xlu0 %797
    %v799 = vlaneseq
    %v800 = vshrl.u32 %v799, 7
    %v801 = vadd.s32 %v800, 96
    %802 = vset.pattern.permute.xlu0 %v801
    %803 = vperm.xlu0 %802, %v726
    %v804 = vpop.permute.xlu0 %803
    %v805 = vlaneseq
    %v806 = vshrl.u32 %v805, 7
    %v807 = vadd.s32 %v806, 104
    %808 = vset.pattern.permute.xlu0 %v807
    %809 = vperm.xlu0 %808, %v726
    %v810 = vpop.permute.xlu0 %809
    %v811 = vlaneseq
    %v812 = vshrl.u32 %v811, 7
    %v813 = vadd.s32 %v812, 112
    %814 = vset.pattern.permute.xlu0 %v813
    %815 = vperm.xlu0 %814, %v726
    %v816 = vpop.permute.xlu0 %815
    %v817 = vlaneseq
    %v818 = vshrl.u32 %v817, 7
    %v819 = vadd.s32 %v818, 120
    %820 = vset.pattern.permute.xlu0 %v819
    %821 = vperm.xlu0 %820, %v726
    %v822 = vpop.permute.xlu0 %821
    %v823 = vperm.slane %v724, 1
    %v824 = vlaneseq
    %v825 = vshrl.u32 %v824, 7
    %827 = vset.pattern.permute.xlu0 %v825
    %828 = vperm.xlu0 %827, %v823
    %v829 = vpop.permute.xlu0 %828
    %v830 = vlaneseq
    %v831 = vshrl.u32 %v830, 7
    %v832 = vadd.s32 %v831, 8
    %833 = vset.pattern.permute.xlu0 %v832
    %834 = vperm.xlu0 %833, %v823
    %v835 = vpop.permute.xlu0 %834
    %v836 = vlaneseq
    %v837 = vshrl.u32 %v836, 7
    %v838 = vadd.s32 %v837, 16
    %839 = vset.pattern.permute.xlu0 %v838
    %840 = vperm.xlu0 %839, %v823
    %v841 = vpop.permute.xlu0 %840
    %v842 = vlaneseq
    %v843 = vshrl.u32 %v842, 7
    %v844 = vadd.s32 %v843, 24
    %845 = vset.pattern.permute.xlu0 %v844
    %846 = vperm.xlu0 %845, %v823
    %v847 = vpop.permute.xlu0 %846
    %v848 = vlaneseq
    %v849 = vshrl.u32 %v848, 7
    %v850 = vadd.s32 %v849, 32
    %851 = vset.pattern.permute.xlu0 %v850
    %852 = vperm.xlu0 %851, %v823
    %v853 = vpop.permute.xlu0 %852
    %v854 = vlaneseq
    %v855 = vshrl.u32 %v854, 7
    %v856 = vadd.s32 %v855, 40
    %857 = vset.pattern.permute.xlu0 %v856
    %858 = vperm.xlu0 %857, %v823
    %v859 = vpop.permute.xlu0 %858
    %v860 = vlaneseq
    %v861 = vshrl.u32 %v860, 7
    %v862 = vadd.s32 %v861, 48
    %863 = vset.pattern.permute.xlu0 %v862
    %864 = vperm.xlu0 %863, %v823
    %v865 = vpop.permute.xlu0 %864
    %v866 = vlaneseq
    %v867 = vshrl.u32 %v866, 7
    %v868 = vadd.s32 %v867, 56
    %869 = vset.pattern.permute.xlu0 %v868
    %870 = vperm.xlu0 %869, %v823
    %v871 = vpop.permute.xlu0 %870
    %v872 = vlaneseq
    %v873 = vshrl.u32 %v872, 7
    %v874 = vadd.s32 %v873, 64
    %875 = vset.pattern.permute.xlu0 %v874
    %876 = vperm.xlu0 %875, %v823
    %v877 = vpop.permute.xlu0 %876
    %v878 = vlaneseq
    %v879 = vshrl.u32 %v878, 7
    %v880 = vadd.s32 %v879, 72
    %881 = vset.pattern.permute.xlu0 %v880
    %882 = vperm.xlu0 %881, %v823
    %v883 = vpop.permute.xlu0 %882
    %v884 = vlaneseq
    %v885 = vshrl.u32 %v884, 7
    %v886 = vadd.s32 %v885, 80
    %887 = vset.pattern.permute.xlu0 %v886
    %888 = vperm.xlu0 %887, %v823
    %v889 = vpop.permute.xlu0 %888
    %v890 = vlaneseq
    %v891 = vshrl.u32 %v890, 7
    %v892 = vadd.s32 %v891, 88
    %893 = vset.pattern.permute.xlu0 %v892
    %894 = vperm.xlu0 %893, %v823
    %v895 = vpop.permute.xlu0 %894
    %v896 = vlaneseq
    %v897 = vshrl.u32 %v896, 7
    %v898 = vadd.s32 %v897, 96
    %899 = vset.pattern.permute.xlu0 %v898
    %900 = vperm.xlu0 %899, %v823
    %v901 = vpop.permute.xlu0 %900
    %v902 = vlaneseq
    %v903 = vshrl.u32 %v902, 7
    %v904 = vadd.s32 %v903, 104
    %905 = vset.pattern.permute.xlu0 %v904
    %906 = vperm.xlu0 %905, %v823
    %v907 = vpop.permute.xlu0 %906
    %v908 = vlaneseq
    %v909 = vshrl.u32 %v908, 7
    %v910 = vadd.s32 %v909, 112
    %911 = vset.pattern.permute.xlu0 %v910
    %912 = vperm.xlu0 %911, %v823
    %v913 = vpop.permute.xlu0 %912
    %v914 = vlaneseq
    %v915 = vshrl.u32 %v914, 7
    %v916 = vadd.s32 %v915, 120
    %917 = vset.pattern.permute.xlu0 %v916
    %918 = vperm.xlu0 %917, %v823
    %v919 = vpop.permute.xlu0 %918
    %v920 = vunpack.c.l.bf16 %v47
    %v921 = vunpack.c.l.bf16 %v48
    %v922 = vunpack.c.l.bf16 %v49
    %v923 = vunpack.c.l.bf16 %v50
    %v924 = vunpack.c.l.bf16 %v51
    %v925 = vunpack.c.l.bf16 %v52
    %v926 = vunpack.c.l.bf16 %v53
    %v927 = vunpack.c.l.bf16 %v54
    %v928 = vunpack.c.l.bf16 %v55
    %v929 = vunpack.c.l.bf16 %v56
    %v930 = vunpack.c.l.bf16 %v57
    %v931 = vunpack.c.l.bf16 %v58
    %v932 = vunpack.c.l.bf16 %v59
    %v933 = vunpack.c.l.bf16 %v60
    %v934 = vunpack.c.l.bf16 %v61
    %v935 = vunpack.c.l.bf16 %v62
    %v936 = vunpack.c.l.bf16 %v63
    %v937 = vunpack.c.l.bf16 %v64
    %v938 = vunpack.c.l.bf16 %v65
    %v939 = vunpack.c.l.bf16 %v66
    %v940 = vunpack.c.l.bf16 %v67
    %v941 = vunpack.c.l.bf16 %v68
    %v942 = vunpack.c.l.bf16 %v69
    %v943 = vunpack.c.l.bf16 %v70
    %v944 = vunpack.c.l.bf16 %v71
    %v945 = vunpack.c.l.bf16 %v72
    %v946 = vunpack.c.l.bf16 %v73
    %v947 = vunpack.c.l.bf16 %v74
    %v948 = vunpack.c.l.bf16 %v75
    %v949 = vunpack.c.l.bf16 %v76
    %v950 = vunpack.c.l.bf16 %v77
    %v951 = vunpack.c.l.bf16 %v78
    %v952 = vmul.f32 %v732, %v920
    %v953 = vmul.f32 %v738, %v921
    %v954 = vmul.f32 %v744, %v922
    %v955 = vmul.f32 %v750, %v923
    %v956 = vmul.f32 %v756, %v924
    %v957 = vmul.f32 %v762, %v925
    %v958 = vmul.f32 %v768, %v926
    %v959 = vmul.f32 %v774, %v927
    %v960 = vmul.f32 %v780, %v928
    %v961 = vmul.f32 %v786, %v929
    %v962 = vmul.f32 %v792, %v930
    %v963 = vmul.f32 %v798, %v931
    %v964 = vmul.f32 %v804, %v932
    %v965 = vmul.f32 %v810, %v933
    %v966 = vmul.f32 %v816, %v934
    %v967 = vmul.f32 %v822, %v935
    %v968 = vmul.f32 %v829, %v936
    %v969 = vmul.f32 %v835, %v937
    %v970 = vmul.f32 %v841, %v938
    %v971 = vmul.f32 %v847, %v939
    %v972 = vmul.f32 %v853, %v940
    %v973 = vmul.f32 %v859, %v941
    %v974 = vmul.f32 %v865, %v942
    %v975 = vmul.f32 %v871, %v943
    %v976 = vmul.f32 %v877, %v944
    %v977 = vmul.f32 %v883, %v945
    %v978 = vmul.f32 %v889, %v946
    %v979 = vmul.f32 %v895, %v947
    %v980 = vmul.f32 %v901, %v948
    %v981 = vmul.f32 %v907, %v949
    %v982 = vmul.f32 %v913, %v950
    %v983 = vmul.f32 %v919, %v951
    %v984 = vadd.f32 %v952, %v953
    %v985 = vadd.f32 %v984, %v954
    %v986 = vadd.f32 %v985, %v955
    %v987 = vadd.f32 %v986, %v956
    %v988 = vadd.f32 %v987, %v957
    %v989 = vadd.f32 %v988, %v958
    %v990 = vadd.f32 %v989, %v959
    %v991 = vadd.f32 %v990, %v960
    %v992 = vadd.f32 %v991, %v961
    %v993 = vadd.f32 %v992, %v962
    %v994 = vadd.f32 %v993, %v963
    %v995 = vadd.f32 %v994, %v964
    %v996 = vadd.f32 %v995, %v965
    %v997 = vadd.f32 %v996, %v966
    %v998 = vadd.f32 %v997, %v967
    %v999 = vrot.slane %v998, 4
    %v1000 = vadd.f32 %v998, %v999
    %v1001 = vrot.slane %v1000, 2
    %v1002 = vadd.f32 %v1000, %v1001
    %v1003 = vrot.slane %v1002, 1
    %v1004 = vadd.f32 %v1002, %v1003
    %v1005 = vadd.f32 %v968, %v969
    %v1006 = vadd.f32 %v1005, %v970
    %v1007 = vadd.f32 %v1006, %v971
    %v1008 = vadd.f32 %v1007, %v972
    %v1009 = vadd.f32 %v1008, %v973
    %v1010 = vadd.f32 %v1009, %v974
    %v1011 = vadd.f32 %v1010, %v975
    %v1012 = vadd.f32 %v1011, %v976
    %v1013 = vadd.f32 %v1012, %v977
    %v1014 = vadd.f32 %v1013, %v978
    %v1015 = vadd.f32 %v1014, %v979
    %v1016 = vadd.f32 %v1015, %v980
    %v1017 = vadd.f32 %v1016, %v981
    %v1018 = vadd.f32 %v1017, %v982
    %v1019 = vadd.f32 %v1018, %v983
    %v1020 = vrot.slane %v1019, 4
    %v1021 = vadd.f32 %v1019, %v1020
    %v1022 = vrot.slane %v1021, 2
    %v1023 = vadd.f32 %v1021, %v1022
    %v1024 = vrot.slane %v1023, 1
    %v1025 = vadd.f32 %v1023, %v1024
    %v1028 = vsel %vm696, %v1025, %v1004
    %1030 = vst [vmem:[#allocation5] sm:$0x3] %v1028
    // Predicated region
    $region34: #{tpu_custom_call.1} parent=1 // pred_check
      _
    $region35: #{tpu_custom_call.1} parent=1 // pred_check_branch
      %1032 = sbr.rel (0) target = $region37
    $region36: #{tpu_custom_call.1} parent=1 // pred_region
      %1034 = vsyncadd [#allocation4], 0
      %s1036 = sshll.u32 [#allocation5], 4
      %s1037 = int_to_ptr.vmem [resolvable:$true] %s1036
      %s1038 = sshll.u32 %s7, 4
      %s1039 = int_to_ptr.hbm [resolvable:$true] %s1038
      %1041 = dma.vmem_to_hbm [thread:$0]  %s1037, 32, %s1039, [#allocation4]
    $region37: #{tpu_custom_call.1} parent=1 // pred_fallthru
      _
    // Predicated region
    $region38: #{tpu_custom_call.1} parent=1 // pred_check
      _
    $region39: #{tpu_custom_call.1} parent=1 // pred_check_branch
      %1043 = sbr.rel (0) target = $region41
    $region40: #{tpu_custom_call.1} parent=1 // pred_region
      %1045 = vsyncadd [#allocation7], 0
      %s1047 = sshll.u32 [#allocation6], 4
      %s1048 = int_to_ptr.vmem [resolvable:$true] %s1047
      %s1049 = sshll.u32 %s8, 4
      %s1050 = int_to_ptr.hbm [resolvable:$true] %s1049
      %1052 = dma.vmem_to_hbm [thread:$0]  %s1048, 32, %s1050, [#allocation7]
    $region41: #{tpu_custom_call.1} parent=1 // pred_fallthru
      _
    // Predicated region
    $region42: #{tpu_custom_call.1} parent=1 // pred_check
      _
    $region43: #{tpu_custom_call.1} parent=1 // pred_check_branch
      %1054 = sbr.rel (0) target = $region45
    $region44: #{tpu_custom_call.1} parent=1 // pred_region
      %1056 = dma.done [#allocation4], 32
    $region45: #{tpu_custom_call.1} parent=1 // pred_fallthru
      _
    // Predicated region
    $region46: #{tpu_custom_call.1} parent=1 // pred_check
      _
    $region47: #{tpu_custom_call.1} parent=1 // pred_check_branch
      %1058 = sbr.rel (0) target = $region49
    $region48: #{tpu_custom_call.1} parent=1 // pred_region
      %1060 = dma.done [#allocation7], 32
    $region49: #{tpu_custom_call.1} parent=1 // pred_fallthru
      _
    %1061 = vsyncpa [#allocation3], 1
    %1062 = vsyncpa [#allocation4], 1
    %1063 = vsyncpa [#allocation7], 1

</llo_original>
